<compile_context>
chip_gen: v6e
topology: v6e:2x2x1
jax: 0.10.0
libtpu: 0.0.40
codegen_flags: <defaults>
</compile_context>

<pallas_src>
import functools
from typing import NamedTuple

import jax
import jax.numpy as jnp
import numpy as np
from jax.experimental import pallas as pl
from jax.experimental.pallas import tpu as pltpu

LOGIT_SCALE = 100.0   # CLIPN default
EPS = 1e-12           # F.normalize default eps
NEG_BIG = -1e30       # finite "-inf" for padded class lanes


def _round_up(n, m):
    return ((n + m - 1) // m) * m


def _resident_spec(shape, index_map):
    """BlockSpec for a VMEM-resident operand (constant index_map).

    Single-buffered (pl.Buffered(1)): it is DMA'd exactly once, so a second
    pipeline buffer would only waste VMEM. Falls back to the default spec on
    jax versions without `pipeline_mode`.
    """
    try:
        return pl.BlockSpec(shape, index_map, pipeline_mode=pl.Buffered(1))
    except (TypeError, AttributeError):
        return pl.BlockSpec(shape, index_map)


def clipn_kernel(x_ref, wv_ref, bv_ref, wall_ref, out_ref, acc_ref, *,
                 n_classes, n_pad):
    """grid = (B tiles 'parallel', K tiles 'arbitrary' reduction)."""
    k = pl.program_id(1)

    @pl.when(k == 0)
    def _init():
        # Bias folded into the accumulator init (saves a (tm, D_pad) VPU pass
        # in the epilogue).
        acc_ref[...] = jnp.broadcast_to(bv_ref[...], acc_ref.shape)

    # TODO(synk): the real CLIP visual tower (ViT / ResNet) is not
    # re-implemented; a deterministic linear projection of the flattened image
    # stands in for `self.visual(images)`.
    # bf16 x / w_vis tiles, f32 accumulation on the MXU.
    acc_ref[...] += jnp.dot(x_ref[...], wv_ref[...],
                            preferred_element_type=jnp.float32)

    @pl.when(k == pl.num_programs(1) - 1)
    def _epilogue():
        feats = acc_ref[...]                                 # (tm, D_pad) f32

        # inputs_norm = F.normalize(feats, dim=-1); rsqrt runs on the EUP.
        sumsq = jnp.sum(feats * feats, axis=-1, keepdims=True)
        inputs_norm = feats * jax.lax.rsqrt(jnp.maximum(sumsq, EPS * EPS))

        # One fused class matmul against bf16 [w_yes.T | w_no.T] (D_pad, 2*N_pad).
        logits_all = LOGIT_SCALE * jnp.dot(
            inputs_norm.astype(wall_ref.dtype), wall_ref[...],
            preferred_element_type=jnp.float32)
        logits_yes = logits_all[:, :n_pad]
        logits_no = logits_all[:, n_pad:]

        lane = jax.lax.broadcasted_iota(jnp.int32, logits_yes.shape, 1)
        logits_yes = jnp.where(lane < n_classes, logits_yes, NEG_BIG)

        # probs = softmax(stack([yes, no]), dim=0)[0]  (stable 2-way softmax).
        # NOTE: approx reciprocal adds ~1e-3-level noise on ctw/atd; switch to
        # approx=False for exact parity with the PyTorch reference.
        m = jnp.maximum(logits_yes, logits_no)
        ey = jnp.exp(logits_yes - m)
        en = jnp.exp(logits_no - m)
        probs = ey * pl.reciprocal(ey + en, approx=True)

        # softmax(logits_yes, dim=1) over real classes only.
        ly_max = jnp.max(logits_yes, axis=1, keepdims=True)
        e = jnp.exp(logits_yes - ly_max)
        sm_yes = e * pl.reciprocal(jnp.sum(e, axis=1, keepdims=True),
                                   approx=True)

        # argmax (first max) via iota/min; gather probs via one-hot.
        idx = jnp.min(jnp.where(logits_yes == ly_max, lane, n_pad),
                      axis=1, keepdims=True)
        onehot = (lane == idx).astype(jnp.float32)

        ctw = 1.0 - jnp.sum(probs * onehot, axis=1, keepdims=True)   # (tm, 1)
        atd = 1.0 - jnp.sum(probs * sm_yes, axis=1, keepdims=True)   # (tm, 1)

        # Lane-dense output slab: one full 128-wide unmasked store per row.
        out_lane = jax.lax.broadcasted_iota(jnp.int32, out_ref.shape, 1)
        out_ref[...] = jnp.where(out_lane == 0, ctw,
                                 jnp.where(out_lane == 1, atd, 0.0))


class CLIPNParams(NamedTuple):
    wv: jax.Array      # (K_pad, D_pad)    bf16  visual projection weight
    bv: jax.Array      # (1, D_pad)        f32   visual projection bias
    w_all: jax.Array   # (D_pad, 2*N_pad)  bf16  [w_yes.T | w_no.T]
    n_classes: int
    n_pad: int
    tk: int


def prepare_clipn_weights(w_vis, b_vis, w_yes, w_no, *, tk_target=2048):
    """One-time weight preprocessing. Call at model init, NOT per forward.

    Pads everything to (8,128)-friendly shapes, casts the streamed / resident
    matmul operands to bf16 (cast *before* padding to avoid a padded-f32 HBM
    round trip), and fuses the yes/no class weights into one matrix.
    """
    K, D = w_vis.shape
    N = w_yes.shape[0]

    tk = min(tk_target, _round_up(K, 128))
    K_pad = _round_up(K, tk)
    D_pad = _round_up(D, 128)
    N_pad = _round_up(N, 128)

    wv = jnp.pad(jnp.asarray(w_vis, jnp.float32).astype(jnp.bfloat16),
                 ((0, K_pad - K), (0, D_pad - D)))
    bv = jnp.pad(jnp.asarray(b_vis, jnp.float32).reshape(1, -1),
                 ((0, 0), (0, D_pad - D)))
    wy = jnp.pad(jnp.asarray(w_yes, jnp.float32).astype(jnp.bfloat16).T,
                 ((0, D_pad - D), (0, N_pad - N)))
    wn = jnp.pad(jnp.asarray(w_no, jnp.float32).astype(jnp.bfloat16).T,
                 ((0, D_pad - D), (0, N_pad - N)))
    w_all = jnp.concatenate([wy, wn], axis=1)      # (D_pad, 2*N_pad) bf16

    return CLIPNParams(wv=wv, bv=bv, w_all=w_all, n_classes=N, n_pad=N_pad,
                       tk=tk)


def _vmem_bytes(tm, tk, d_pad, n_pad):
    x_b = 2 * tm * tk * 2              # x tiles, bf16, double-buffered
    wv_b = 2 * tk * d_pad * 2          # w_vis tiles, bf16, double-buffered
    bias_b = 2 * d_pad * 4             # conservative (double-buffer fallback)
    wall_b = 2 * d_pad * (2 * n_pad) * 2
    out_b = 2 * tm * 128 * 4
    acc_b = tm * d_pad * 4
    return x_b + wv_b + bias_b + wall_b + out_b + acc_b


def clipn_forward(images, params: CLIPNParams, score="atd", *,
                  tm_target=256, b_tiles_min=1):
    """images: [B, C, H, W] (NCHW); params from prepare_clipn_weights().

    tm_target=256 matches the v6e/v7x 256-wide MXU (use 128 on v5e).
    Set b_tiles_min=2 on v7x for multi-tile batches so the 'parallel' B axis
    shards across both TensorCores.
    """
    B = images.shape[0]
    x = images.reshape(B, -1).astype(jnp.bfloat16)   # cast before padding
    K = x.shape[1]
    K_pad, D_pad = params.wv.shape
    n_pad = params.n_pad
    tk = params.tk
    assert K <= K_pad and K_pad % tk == 0, "params do not match image shape"

    B_pad8 = _round_up(max(B, 1), 8)
    tm = min(tm_target, B_pad8)
    if b_tiles_min > 1 and B_pad8 // tm < b_tiles_min:
        tm = max(8, _round_up(-(-B_pad8 // b_tiles_min), 8))
    B_pad = _round_up(B_pad8, tm)

    x_p = jnp.pad(x, ((0, B_pad - B), (0, K_pad - K)))

    grid = (B_pad // tm, K_pad // tk)

    need = _vmem_bytes(tm, tk, D_pad, n_pad)
    vmem_limit = max(need + need // 2 + (2 << 20), 16 << 20)
    vmem_limit = min(vmem_limit, 48 << 20)   # stays inside v7x's 64 MiB VMEM

    kernel = functools.partial(clipn_kernel, n_classes=params.n_classes,
                               n_pad=n_pad)

    out = pl.pallas_call(
        kernel,
        grid=grid,
        in_specs=[
            pl.BlockSpec((tm, tk), lambda i, k: (i, k)),         # x (bf16)
            pl.BlockSpec((tk, D_pad), lambda i, k: (k, 0)),      # w_vis (bf16)
            _resident_spec((1, D_pad), lambda i, k: (0, 0)),     # bias (f32)
            _resident_spec((D_pad, 2 * n_pad), lambda i, k: (0, 0)),  # w_all
        ],
        out_specs=pl.BlockSpec((tm, 128), lambda i, k: (i, 0)),
        out_shape=jax.ShapeDtypeStruct((B_pad, 128), jnp.float32),
        scratch_shapes=[pltpu.VMEM((tm, D_pad), jnp.float32)],
        compiler_params=pltpu.CompilerParams(
            dimension_semantics=("parallel", "arbitrary"),
            vmem_limit_bytes=int(vmem_limit)),
    )(x_p, params.wv, params.bv, params.w_all)

    ctw = out[:B, 0]
    atd = out[:B, 1]
    if score == "ctw":
        return ctw
    if score == "atd":
        return atd
    if score == "all":
        return ctw, atd
    raise ValueError(f"Unknown score type: {score}")


def _q_bf16(a):
    return np.asarray(
        jnp.asarray(a, jnp.float32).astype(jnp.bfloat16).astype(jnp.float32),
        np.float64)


def ref_forward_numpy(images, w_vis, b_vis, w_yes, w_no):
    """float64 reference applying the same bf16 input/weight quantization as
    the kernel (the matmul accumulation itself stays high precision)."""
    x = _q_bf16(np.asarray(images).reshape(images.shape[0], -1))
    feats = x @ _q_bf16(w_vis) + np.asarray(b_vis, np.float64).reshape(1, -1)
    n = np.maximum(np.linalg.norm(feats, axis=-1, keepdims=True), EPS)
    f = _q_bf16(feats / n)               # kernel casts inputs_norm to bf16 too
    ly = LOGIT_SCALE * (f @ _q_bf16(w_yes).T)
    ln = LOGIT_SCALE * (f @ _q_bf16(w_no).T)
    stacked = np.stack([ly, ln])
    e = np.exp(stacked - stacked.max(0, keepdims=True))
    probs = (e / e.sum(0, keepdims=True))[0]
    sm = np.exp(ly - ly.max(1, keepdims=True))
    sm /= sm.sum(1, keepdims=True)
    idx = ly.argmax(1)
    ctw = 1.0 - probs[np.arange(ly.shape[0]), idx]
    atd = 1.0 - (probs * sm).sum(1)
    return ctw, atd


if __name__ == "__main__":
    # small shapes consistent with the module's forward
    B, C, H, W = 2, 4, 16, 16      # images
    D = 32                         # embedding dim (CLIP embed dim stand-in)
    N = 16                         # number of classes / prompted words

    key = jax.random.PRNGKey(0)
    k_img, k_wv, k_wy, k_wn = jax.random.split(key, 4)

    images = jax.random.normal(k_img, (B, C, H, W), jnp.float32)

    # TODO(synk): setup_prompts (tokenize + dual "yes"/"no" text transformers)
    # is not reproduced; _weight_yes / _weight_no are synthesized as unit-norm
    # rows, matching the F.normalize(...) that encode_text applies.
    w_vis = 0.02 * jax.random.normal(k_wv, (C * H * W, D), jnp.float32)
    b_vis = jnp.zeros((1, D), jnp.float32)
    w_yes = jax.random.normal(k_wy, (N, D), jnp.float32)
    w_yes = w_yes / jnp.linalg.norm(w_yes, axis=-1, keepdims=True)
    w_no = jax.random.normal(k_wn, (N, D), jnp.float32)
    w_no = w_no / jnp.linalg.norm(w_no, axis=-1, keepdims=True)

    # One-time weight preprocessing (hoisted out of the forward path).
    params = prepare_clipn_weights(w_vis, b_vis, w_yes, w_no)

    ctw, atd = clipn_forward(images, params, score="all")
    jax.block_until_ready((ctw, atd))

    ctw_ref, atd_ref = ref_forward_numpy(np.asarray(images), np.asarray(w_vis),
                                         np.asarray(b_vis), np.asarray(w_yes),
                                         np.asarray(w_no))
    assert ctw.shape == (B,) and atd.shape == (B,)
    # Reference uses matched bf16 quantization; remaining error is f32
    # accumulation + approx reciprocal, well inside 1e-2.
    np.testing.assert_allclose(np.asarray(ctw), ctw_ref, rtol=1e-2, atol=1e-2)
    np.testing.assert_allclose(np.asarray(atd), atd_ref, rtol=1e-2, atol=1e-2)
    print("KERNEL_OK")
</pallas_src>

<mosaic_0001>
module attributes {stable_mosaic.version = 11 : i64} {
  func.func @clipn_kernel(%arg0: i32, %arg1: i32, %arg2: memref<8x1024xbf16, #tpu.memory_space<vmem>>, %arg3: memref<1024x128xbf16, #tpu.memory_space<vmem>>, %arg4: memref<1x128xf32, #tpu.memory_space<vmem>>, %arg5: memref<128x256xbf16, #tpu.memory_space<vmem>>, %arg6: memref<8x128xf32, #tpu.memory_space<vmem>>, %arg7: memref<8x128xf32, #tpu.memory_space<vmem>>) attributes {dimension_semantics = [#tpu.dimension_semantics<parallel>, #tpu.dimension_semantics<arbitrary>], iteration_bounds = array<i64: 1, 1>, scalar_prefetch = 0 : i64, scratch_operands = 1 : i64, tpu.core_type = #tpu.core_type<tc>, window_params = [{transform_indices = @transform_0, window_bounds = array<i64: 8, 1024>}, {transform_indices = @transform_1, window_bounds = array<i64: 1024, 128>}, {pipeline_mode = #tpu.pipeline_mode<synchronous>, transform_indices = @transform_2, window_bounds = array<i64: 1, 128>}, {pipeline_mode = #tpu.pipeline_mode<synchronous>, transform_indices = @transform_3, window_bounds = array<i64: 128, 256>}, {transform_indices = @transform_4, window_bounds = array<i64: 8, 128>}]} {
    %c0_i32 = arith.constant 0 : i32
    %0 = arith.cmpi eq, %arg1, %c0_i32 : i32
    %1 = arith.extui %0 : i1 to i32
    %c0_i32_0 = arith.constant 0 : i32
    %2 = arith.cmpi ne, %1, %c0_i32_0 : i32
    scf.if %2 {
      %c0_10 = arith.constant 0 : index
      %c0_11 = arith.constant 0 : index
      %12 = vector.load %arg4[%c0_10, %c0_11] : memref<1x128xf32, #tpu.memory_space<vmem>>, vector<1x128xf32>
      %13 = vector.shape_cast %12 : vector<1x128xf32> to vector<1x128xf32>
      %14 = vector.broadcast %13 : vector<1x128xf32> to vector<8x128xf32>
      %c0_12 = arith.constant 0 : index
      %c0_13 = arith.constant 0 : index
      %15 = vector.load %arg7[%c0_12, %c0_13] : memref<8x128xf32, #tpu.memory_space<vmem>>, vector<8x128xf32>
      tpu.vector_store %arg7[%c0_12, %c0_13], %14 {strides = array<i32>} : memref<8x128xf32, #tpu.memory_space<vmem>>, vector<8x128xf32>,
    } else {
    }
    %c0 = arith.constant 0 : index
    %c0_1 = arith.constant 0 : index
    %3 = vector.load %arg7[%c0, %c0_1] : memref<8x128xf32, #tpu.memory_space<vmem>>, vector<8x128xf32>
    %c0_2 = arith.constant 0 : index
    %c0_3 = arith.constant 0 : index
    %4 = vector.load %arg2[%c0_2, %c0_3] : memref<8x1024xbf16, #tpu.memory_space<vmem>>, vector<8x1024xbf16>
    %c0_4 = arith.constant 0 : index
    %c0_5 = arith.constant 0 : index
    %5 = vector.load %arg3[%c0_4, %c0_5] : memref<1024x128xbf16, #tpu.memory_space<vmem>>, vector<1024x128xbf16>
    %cst = arith.constant dense<0.000000e+00> : vector<8x128xf32>
    %6 = tpu.matmul %4, %5, %cst {dimension_numbers = #tpu.dot_dimension_numbers<[1], [0], [0], [1], [0, 0, 1, 1], [], []>} : vector<8x1024xbf16>, vector<1024x128xbf16>, vector<8x128xf32> -> vector<8x128xf32>
    %7 = arith.addf %3, %6 : vector<8x128xf32>
    %c0_6 = arith.constant 0 : index
    %c0_7 = arith.constant 0 : index
    %8 = vector.load %arg7[%c0_6, %c0_7] : memref<8x128xf32, #tpu.memory_space<vmem>>, vector<8x128xf32>
    tpu.vector_store %arg7[%c0_6, %c0_7], %7 {strides = array<i32>} : memref<8x128xf32, #tpu.memory_space<vmem>>, vector<8x128xf32>,
    %c0_i32_8 = arith.constant 0 : i32
    %9 = arith.cmpi eq, %arg1, %c0_i32_8 : i32
    %10 = arith.extui %9 : i1 to i32
    %c0_i32_9 = arith.constant 0 : i32
    %11 = arith.cmpi ne, %10, %c0_i32_9 : i32
    scf.if %11 {
      %c0_10 = arith.constant 0 : index
      %c0_11 = arith.constant 0 : index
      %12 = vector.load %arg7[%c0_10, %c0_11] : memref<8x128xf32, #tpu.memory_space<vmem>>, vector<8x128xf32>
      %13 = arith.mulf %12, %12 : vector<8x128xf32>
      %cst_12 = arith.constant dense<0.000000e+00> : vector<8xf32>
      %14 = vector.multi_reduction <add>, %13, %cst_12 [1] : vector<8x128xf32> to vector<8xf32>
      %15 = vector.shape_cast %14 : vector<8xf32> to vector<8x1xf32>
      %cst_13 = arith.constant 1.000000e-24 : f32
      %16 = vector.broadcast %cst_13 : f32 to vector<8x1xf32>
      %17 = arith.maximumf %15, %16 : vector<8x1xf32>
      %18 = math.rsqrt %17 : vector<8x1xf32>
      %19 = vector.broadcast %18 : vector<8x1xf32> to vector<8x128xf32>
      %20 = arith.mulf %12, %19 : vector<8x128xf32>
      %21 = arith.truncf %20 : vector<8x128xf32> to vector<8x128xbf16>
      %c0_14 = arith.constant 0 : index
      %c0_15 = arith.constant 0 : index
      %22 = vector.load %arg5[%c0_14, %c0_15] : memref<128x256xbf16, #tpu.memory_space<vmem>>, vector<128x256xbf16>
      %cst_16 = arith.constant dense<0.000000e+00> : vector<8x256xf32>
      %23 = tpu.matmul %21, %22, %cst_16 {dimension_numbers = #tpu.dot_dimension_numbers<[1], [0], [0], [1], [0, 0, 1, 1], [], []>} : vector<8x128xbf16>, vector<128x256xbf16>, vector<8x256xf32> -> vector<8x256xf32>
      %cst_17 = arith.constant 1.000000e+02 : f32
      %24 = vector.broadcast %cst_17 : f32 to vector<8x256xf32>
      %25 = arith.mulf %24, %23 : vector<8x256xf32>
      %26 = vector.extract_strided_slice %25 {offsets = [0, 0], sizes = [8, 128], strides = [1, 1]} : vector<8x256xf32> to vector<8x128xf32>
      %27 = vector.extract_strided_slice %25 {offsets = [0, 128], sizes = [8, 128], strides = [1, 1]} : vector<8x256xf32> to vector<8x128xf32>
      %28 = tpu.iota {dimensions = array<i32: 1>} : vector<8x128xi32>
      %c16_i32 = arith.constant 16 : i32
      %29 = vector.broadcast %c16_i32 : i32 to vector<8x128xi32>
      %30 = arith.cmpi slt, %28, %29 : vector<8x128xi32>
      %cst_18 = arith.constant -1.000000e+30 : f32
      %31 = vector.broadcast %cst_18 : f32 to vector<8x128xf32>
      %32 = arith.select %30, %26, %31 : vector<8x128xi1>, vector<8x128xf32>
      %33 = arith.maximumf %32, %27 : vector<8x128xf32>
      %34 = arith.subf %32, %33 : vector<8x128xf32>
      %35 = math.exp %34 : vector<8x128xf32>
      %36 = arith.subf %27, %33 : vector<8x128xf32>
      %37 = math.exp %36 : vector<8x128xf32>
      %38 = arith.addf %35, %37 : vector<8x128xf32>
      %39 = tpu.reciprocal %38 {approx = true} : vector<8x128xf32> -> vector<8x128xf32>
      %40 = arith.mulf %35, %39 : vector<8x128xf32>
      %cst_19 = arith.constant dense<0xFF800000> : vector<8xf32>
      %41 = vector.multi_reduction <maximumf>, %32, %cst_19 [1] : vector<8x128xf32> to vector<8xf32>
      %42 = vector.shape_cast %41 : vector<8xf32> to vector<8x1xf32>
      %43 = vector.broadcast %42 : vector<8x1xf32> to vector<8x128xf32>
      %44 = arith.subf %32, %43 : vector<8x128xf32>
      %45 = math.exp %44 : vector<8x128xf32>
      %cst_20 = arith.constant dense<0.000000e+00> : vector<8xf32>
      %46 = vector.multi_reduction <add>, %45, %cst_20 [1] : vector<8x128xf32> to vector<8xf32>
      %47 = vector.shape_cast %46 : vector<8xf32> to vector<8x1xf32>
      %48 = tpu.reciprocal %47 {approx = true} : vector<8x1xf32> -> vector<8x1xf32>
      %49 = vector.broadcast %48 : vector<8x1xf32> to vector<8x128xf32>
      %50 = arith.mulf %45, %49 : vector<8x128xf32>
      %51 = vector.broadcast %42 : vector<8x1xf32> to vector<8x128xf32>
      %52 = arith.cmpf oeq, %32, %51 : vector<8x128xf32>
      %c128_i32 = arith.constant 128 : i32
      %53 = vector.broadcast %c128_i32 : i32 to vector<8x128xi32>
      %54 = arith.select %52, %28, %53 : vector<8x128xi1>, vector<8x128xi32>
      %cst_21 = arith.constant dense<2147483647> : vector<8xi32>
      %55 = vector.multi_reduction <minsi>, %54, %cst_21 [1] : vector<8x128xi32> to vector<8xi32>
      %56 = vector.shape_cast %55 : vector<8xi32> to vector<8x1xi32>
      %57 = vector.broadcast %56 : vector<8x1xi32> to vector<8x128xi32>
      %58 = arith.cmpi eq, %28, %57 : vector<8x128xi32>
      %59 = arith.extui %58 : vector<8x128xi1> to vector<8x128xi32>
      %60 = arith.sitofp %59 : vector<8x128xi32> to vector<8x128xf32>
      %61 = arith.mulf %40, %60 : vector<8x128xf32>
      %cst_22 = arith.constant dense<0.000000e+00> : vector<8xf32>
      %62 = vector.multi_reduction <add>, %61, %cst_22 [1] : vector<8x128xf32> to vector<8xf32>
      %63 = vector.shape_cast %62 : vector<8xf32> to vector<8x1xf32>
      %cst_23 = arith.constant 1.000000e+00 : f32
      %64 = vector.broadcast %cst_23 : f32 to vector<8x1xf32>
      %65 = arith.subf %64, %63 : vector<8x1xf32>
      %66 = arith.mulf %40, %50 : vector<8x128xf32>
      %cst_24 = arith.constant dense<0.000000e+00> : vector<8xf32>
      %67 = vector.multi_reduction <add>, %66, %cst_24 [1] : vector<8x128xf32> to vector<8xf32>
      %68 = vector.shape_cast %67 : vector<8xf32> to vector<8x1xf32>
      %cst_25 = arith.constant 1.000000e+00 : f32
      %69 = vector.broadcast %cst_25 : f32 to vector<8x1xf32>
      %70 = arith.subf %69, %68 : vector<8x1xf32>
      %71 = tpu.iota {dimensions = array<i32: 1>} : vector<8x128xi32>
      %c0_i32_26 = arith.constant 0 : i32
      %72 = vector.broadcast %c0_i32_26 : i32 to vector<8x128xi32>
      %73 = arith.cmpi eq, %71, %72 : vector<8x128xi32>
      %c1_i32 = arith.constant 1 : i32
      %74 = vector.broadcast %c1_i32 : i32 to vector<8x128xi32>
      %75 = arith.cmpi eq, %71, %74 : vector<8x128xi32>
      %cst_27 = arith.constant 0.000000e+00 : f32
      %76 = vector.shape_cast %70 : vector<8x1xf32> to vector<8x1xf32>
      %77 = vector.broadcast %76 : vector<8x1xf32> to vector<8x128xf32>
      %78 = vector.broadcast %cst_27 : f32 to vector<8x128xf32>
      %79 = arith.select %75, %77, %78 : vector<8x128xi1>, vector<8x128xf32>
      %80 = vector.shape_cast %65 : vector<8x1xf32> to vector<8x1xf32>
      %81 = vector.broadcast %80 : vector<8x1xf32> to vector<8x128xf32>
      %82 = arith.select %73, %81, %79 : vector<8x128xi1>, vector<8x128xf32>
      %c0_28 = arith.constant 0 : index
      %c0_29 = arith.constant 0 : index
      %83 = vector.load %arg6[%c0_28, %c0_29] : memref<8x128xf32, #tpu.memory_space<vmem>>, vector<8x128xf32>
      tpu.vector_store %arg6[%c0_28, %c0_29], %82 {strides = array<i32>} : memref<8x128xf32, #tpu.memory_space<vmem>>, vector<8x128xf32>,
    } else {
    }
    return
  }
  func.func @transform_0(%arg0: i32, %arg1: i32) -> (i32, i32) {
    %c0_i32 = arith.constant 0 : i32
    return %arg0, %arg1 : i32, i32
  }
  func.func @transform_1(%arg0: i32, %arg1: i32) -> (i32, i32) {
    %c0_i32 = arith.constant 0 : i32
    %c0_i32_0 = arith.constant 0 : i32
    return %arg1, %c0_i32 : i32, i32
  }
  func.func @transform_2(%arg0: i32, %arg1: i32) -> (i32, i32) {
    %c0_i32 = arith.constant 0 : i32
    %c0_i32_0 = arith.constant 0 : i32
    %c0_i32_1 = arith.constant 0 : i32
    return %c0_i32, %c0_i32_0 : i32, i32
  }
  func.func @transform_3(%arg0: i32, %arg1: i32) -> (i32, i32) {
    %c0_i32 = arith.constant 0 : i32
    %c0_i32_0 = arith.constant 0 : i32
    %c0_i32_1 = arith.constant 0 : i32
    return %c0_i32, %c0_i32_0 : i32, i32
  }
  func.func @transform_4(%arg0: i32, %arg1: i32) -> (i32, i32) {
    %c0_i32 = arith.constant 0 : i32
    %c0_i32_0 = arith.constant 0 : i32
    return %arg0, %c0_i32 : i32, i32
  }
}

</mosaic_0001>

<llo_original>
// kernel: tpu_custom_call.1
$region0: #{tpu_custom_call.1}
  #allocation0 [shape = 'u32[]', space=smem, size = 0x4, offset = 0x4, fixed_abs, tag = 'smem constant byte address 0x4 - core index']
  #allocation1 [shape = 'u32[144,128]{1,0:T(1,128)}', space=vmem, size = 0x12000, scoped, tag = 'internal scratch']
  #allocation2 [shape = 'f32[8,128]{1,0:T(8,128)}', space=vmem, size = 0x1000, scoped, tag = 'scratch operand']
  %s0 = inlined_call_operand.hbm [shape: bf16[8,1024], index: 0, kind: input, shape index: {}]
  %s1 = inlined_call_operand.hbm [shape: bf16[1024,128], index: 1, kind: input, shape index: {}]
  %s2 = inlined_call_operand.vmem [shape: f32[1,128], index: 2, kind: input, shape index: {}]
  %s3 = inlined_call_operand.hbm [shape: bf16[128,256], index: 3, kind: input, shape index: {}]
  %s4 = inlined_call_operand.hbm [shape: f32[8,128], index: 4, kind: output, shape index: {}]
  %s5 = sld [smem:[#allocation0]]
  $region46: #{tpu_custom_call.1} parent=0
    _
  %s7 = ssub.s32 1, %s5
  %s8 = scalar_select 0, %s7, %s5
  $region1: #{tpu_custom_call.1} parent=0
    #allocation3 [shape = 'u8[16384]{0}', space=vmem, size = 0x4000, scoped, tag = 'input window, operand 0, single buffered']
    #allocation4 [shape = 's32[1]{0}', space=sflag, size = 0x4, scoped, tag = 'scoped memory for tpu_custom_call.1']
    #allocation5 [shape = 's32[1]{0}', space=sflag, size = 0x4, scoped, tag = 'scoped memory for tpu_custom_call.1']
    #allocation6 [shape = 'u8[262144]{0}', space=vmem, size = 0x40000, scoped, tag = 'input window, operand 1, single buffered']
    #allocation7 [shape = 's32[1]{0}', space=sflag, size = 0x4, scoped, tag = 'scoped memory for tpu_custom_call.1']
    #allocation8 [shape = 'u8[65536]{0}', space=vmem, size = 0x10000, scoped, tag = 'input window, operand 3, single buffered']
    #allocation9 [shape = 'u8[4096]{0}', space=vmem, size = 0x1000, scoped, tag = 'output window, operand 0, single buffered']
    %9 = vsyncpa [#allocation4], 0
    %10 = vsyncpa [#allocation7], 0
    %11 = vsyncpa [#allocation5], 0
    // Predicated region
    $region2: #{tpu_custom_call.1} parent=1 // pred_check
      _
    $region3: #{tpu_custom_call.1} parent=1 // pred_check_branch
      %13 = sbr.rel (0) target = $region5
    $region4: #{tpu_custom_call.1} parent=1 // pred_region
      %s15 = ssub.s32 512, 512
      %16 = vsyncadd [#allocation4], %s15
      %s18 = sshll.u32 [#allocation3], 4
      %s19 = int_to_ptr.vmem [resolvable:$true] %s18
      %21 = dma.hbm_to_vmem [thread:$0]  %s0, 512, %s19, [#allocation4]
    $region5: #{tpu_custom_call.1} parent=1 // pred_fallthru
      _
    // Predicated region
    $region6: #{tpu_custom_call.1} parent=1 // pred_check
      _
    $region7: #{tpu_custom_call.1} parent=1 // pred_check_branch
      %23 = sbr.rel (0) target = $region9
    $region8: #{tpu_custom_call.1} parent=1 // pred_region
      %s25 = ssub.s32 8192, 8192
      %26 = vsyncadd [#allocation7], %s25
      %s27 = sshll.u32 [#allocation6], 4
      %s28 = int_to_ptr.vmem [resolvable:$true] %s27
      %33 = dma.hbm_to_vmem [thread:$0]  %s1, 8192, %s28, [#allocation7], 64, 64, 4
    $region9: #{tpu_custom_call.1} parent=1 // pred_fallthru
      _
    // Predicated region
    $region10: #{tpu_custom_call.1} parent=1 // pred_check
      _
    $region11: #{tpu_custom_call.1} parent=1 // pred_check_branch
      %35 = sbr.rel (0) target = $region13
    $region12: #{tpu_custom_call.1} parent=1 // pred_region
      _
    $region13: #{tpu_custom_call.1} parent=1 // pred_fallthru
      _
    // Predicated region
    $region14: #{tpu_custom_call.1} parent=1 // pred_check
      _
    $region15: #{tpu_custom_call.1} parent=1 // pred_check_branch
      %37 = sbr.rel (0) target = $region17
    $region16: #{tpu_custom_call.1} parent=1 // pred_region
      %s39 = ssub.s32 2048, 2048
      %40 = vsyncadd [#allocation7], %s39
      %s41 = sshll.u32 [#allocation8], 4
      %s42 = int_to_ptr.vmem [resolvable:$true] %s41
      %47 = dma.hbm_to_vmem [thread:$0]  %s3, 2048, %s42, [#allocation7], 128, 128, 8
    $region17: #{tpu_custom_call.1} parent=1 // pred_fallthru
      _
    // Predicated region
    $region18: #{tpu_custom_call.1} parent=1 // pred_check
      _
    $region19: #{tpu_custom_call.1} parent=1 // pred_check_branch
      %49 = sbr.rel (0) target = $region21
    $region20: #{tpu_custom_call.1} parent=1 // pred_region
      %50 = dma.done [#allocation4], 512
    $region21: #{tpu_custom_call.1} parent=1 // pred_fallthru
      _
    // Predicated region
    $region22: #{tpu_custom_call.1} parent=1 // pred_check
      _
    $region23: #{tpu_custom_call.1} parent=1 // pred_check_branch
      %52 = sbr.rel (0) target = $region25
    $region24: #{tpu_custom_call.1} parent=1 // pred_region
      %53 = dma.done [#allocation7], 8192
    $region25: #{tpu_custom_call.1} parent=1 // pred_fallthru
      _
    // Predicated region
    $region26: #{tpu_custom_call.1} parent=1 // pred_check
      _
    $region27: #{tpu_custom_call.1} parent=1 // pred_check_branch
      %55 = sbr.rel (0) target = $region29
    $region28: #{tpu_custom_call.1} parent=1 // pred_region
      %56 = dma.done [#allocation7], 2048
    $region29: #{tpu_custom_call.1} parent=1 // pred_fallthru
      _
    %p58 = scmp.eq.s32.totalorder 0, 0
    // Predicated region
    $region30: #{tpu_custom_call.1} parent=1 // pred_check
      %p59 = pneg %p58
    $region31: #{tpu_custom_call.1} parent=1 // pred_check_branch
      %61 = sbr.rel (%p59) target = $region33
    $region32: #{tpu_custom_call.1} parent=1 // pred_region
      %v62 = vld [vmem:[%s2] sm:$0x1]
      %v64 = vlaneseq
      %v65 = vshrl.u32 %v64, 7
      %v66 = vsub.s32 0, %v65
      %v67 = vrot.slane %v62, %v66
      %69 = vst [vmem:[#allocation2] sm:$0xff] %v67
    $region33: #{tpu_custom_call.1} parent=1 // pred_fallthru
      _
    %v70 = vld [vmem:[#allocation2] sm:$0xff]
    %v71 = vld [vmem:[#allocation3] sm:$0xff]
    %v72 = vld [vmem:[#allocation3 + $0x8] sm:$0xff]
    %v73 = vld [vmem:[#allocation3 + $0x10] sm:$0xff]
    %v74 = vld [vmem:[#allocation3 + $0x18] sm:$0xff]
    %v75 = vld [vmem:[#allocation6] sm:$0xf]
    %v76 = vld [vmem:[#allocation6 + $0x4] sm:$0xf]
    %v77 = vld [vmem:[#allocation6 + $0x8] sm:$0xf]
    %v78 = vld [vmem:[#allocation6 + $0xc] sm:$0xf]
    %v79 = vld [vmem:[#allocation6 + $0x10] sm:$0xf]
    %v80 = vld [vmem:[#allocation6 + $0x14] sm:$0xf]
    %v81 = vld [vmem:[#allocation6 + $0x18] sm:$0xf]
    %v82 = vld [vmem:[#allocation6 + $0x1c] sm:$0xf]
    %v83 = vld [vmem:[#allocation6 + $0x20] sm:$0xf]
    %v84 = vld [vmem:[#allocation6 + $0x24] sm:$0xf]
    %v85 = vld [vmem:[#allocation6 + $0x28] sm:$0xf]
    %v86 = vld [vmem:[#allocation6 + $0x2c] sm:$0xf]
    %v87 = vld [vmem:[#allocation6 + $0x30] sm:$0xf]
    %v88 = vld [vmem:[#allocation6 + $0x34] sm:$0xf]
    %v89 = vld [vmem:[#allocation6 + $0x38] sm:$0xf]
    %v90 = vld [vmem:[#allocation6 + $0x3c] sm:$0xf]
    %v91 = vld [vmem:[#allocation6 + $0x40] sm:$0xf]
    %v92 = vld [vmem:[#allocation6 + $0x44] sm:$0xf]
    %v93 = vld [vmem:[#allocation6 + $0x48] sm:$0xf]
    %v94 = vld [vmem:[#allocation6 + $0x4c] sm:$0xf]
    %v95 = vld [vmem:[#allocation6 + $0x50] sm:$0xf]
    %v96 = vld [vmem:[#allocation6 + $0x54] sm:$0xf]
    %v97 = vld [vmem:[#allocation6 + $0x58] sm:$0xf]
    %v98 = vld [vmem:[#allocation6 + $0x5c] sm:$0xf]
    %v99 = vld [vmem:[#allocation6 + $0x60] sm:$0xf]
    %v100 = vld [vmem:[#allocation6 + $0x64] sm:$0xf]
    %v101 = vld [vmem:[#allocation6 + $0x68] sm:$0xf]
    %v102 = vld [vmem:[#allocation6 + $0x6c] sm:$0xf]
    %v103 = vld [vmem:[#allocation6 + $0x70] sm:$0xf]
    %v104 = vld [vmem:[#allocation6 + $0x74] sm:$0xf]
    %v105 = vld [vmem:[#allocation6 + $0x78] sm:$0xf]
    %v106 = vld [vmem:[#allocation6 + $0x7c] sm:$0xf]
    %v107 = vld [vmem:[#allocation6 + $0x80] sm:$0xf]
    %v108 = vld [vmem:[#allocation6 + $0x84] sm:$0xf]
    %v109 = vld [vmem:[#allocation6 + $0x88] sm:$0xf]
    %v110 = vld [vmem:[#allocation6 + $0x8c] sm:$0xf]
    %v111 = vld [vmem:[#allocation6 + $0x90] sm:$0xf]
    %v112 = vld [vmem:[#allocation6 + $0x94] sm:$0xf]
    %v113 = vld [vmem:[#allocation6 + $0x98] sm:$0xf]
    %v114 = vld [vmem:[#allocation6 + $0x9c] sm:$0xf]
    %v115 = vld [vmem:[#allocation6 + $0xa0] sm:$0xf]
    %v116 = vld [vmem:[#allocation6 + $0xa4] sm:$0xf]
    %v117 = vld [vmem:[#allocation6 + $0xa8] sm:$0xf]
    %v118 = vld [vmem:[#allocation6 + $0xac] sm:$0xf]
    %v119 = vld [vmem:[#allocation6 + $0xb0] sm:$0xf]
    %v120 = vld [vmem:[#allocation6 + $0xb4] sm:$0xf]
    %v121 = vld [vmem:[#allocation6 + $0xb8] sm:$0xf]
    %v122 = vld [vmem:[#allocation6 + $0xbc] sm:$0xf]
    %v123 = vld [vmem:[#allocation6 + $0xc0] sm:$0xf]
    %v124 = vld [vmem:[#allocation6 + $0xc4] sm:$0xf]
    %v125 = vld [vmem:[#allocation6 + $0xc8] sm:$0xf]
    %v126 = vld [vmem:[#allocation6 + $0xcc] sm:$0xf]
    %v127 = vld [vmem:[#allocation6 + $0xd0] sm:$0xf]
    %v128 = vld [vmem:[#allocation6 + $0xd4] sm:$0xf]
    %v129 = vld [vmem:[#allocation6 + $0xd8] sm:$0xf]
    %v130 = vld [vmem:[#allocation6 + $0xdc] sm:$0xf]
    %v131 = vld [vmem:[#allocation6 + $0xe0] sm:$0xf]
    %v132 = vld [vmem:[#allocation6 + $0xe4] sm:$0xf]
    %v133 = vld [vmem:[#allocation6 + $0xe8] sm:$0xf]
    %v134 = vld [vmem:[#allocation6 + $0xec] sm:$0xf]
    %v135 = vld [vmem:[#allocation6 + $0xf0] sm:$0xf]
    %v136 = vld [vmem:[#allocation6 + $0xf4] sm:$0xf]
    %v137 = vld [vmem:[#allocation6 + $0xf8] sm:$0xf]
    %v138 = vld [vmem:[#allocation6 + $0xfc] sm:$0xf]
    %v139 = vld [vmem:[#allocation6 + $0x100] sm:$0xf]
    %v140 = vld [vmem:[#allocation6 + $0x104] sm:$0xf]
    %v141 = vld [vmem:[#allocation6 + $0x108] sm:$0xf]
    %v142 = vld [vmem:[#allocation6 + $0x10c] sm:$0xf]
    %v143 = vld [vmem:[#allocation6 + $0x110] sm:$0xf]
    %v144 = vld [vmem:[#allocation6 + $0x114] sm:$0xf]
    %v145 = vld [vmem:[#allocation6 + $0x118] sm:$0xf]
    %v146 = vld [vmem:[#allocation6 + $0x11c] sm:$0xf]
    %v147 = vld [vmem:[#allocation6 + $0x120] sm:$0xf]
    %v148 = vld [vmem:[#allocation6 + $0x124] sm:$0xf]
    %v149 = vld [vmem:[#allocation6 + $0x128] sm:$0xf]
    %v150 = vld [vmem:[#allocation6 + $0x12c] sm:$0xf]
    %v151 = vld [vmem:[#allocation6 + $0x130] sm:$0xf]
    %v152 = vld [vmem:[#allocation6 + $0x134] sm:$0xf]
    %v153 = vld [vmem:[#allocation6 + $0x138] sm:$0xf]
    %v154 = vld [vmem:[#allocation6 + $0x13c] sm:$0xf]
    %v155 = vld [vmem:[#allocation6 + $0x140] sm:$0xf]
    %v156 = vld [vmem:[#allocation6 + $0x144] sm:$0xf]
    %v157 = vld [vmem:[#allocation6 + $0x148] sm:$0xf]
    %v158 = vld [vmem:[#allocation6 + $0x14c] sm:$0xf]
    %v159 = vld [vmem:[#allocation6 + $0x150] sm:$0xf]
    %v160 = vld [vmem:[#allocation6 + $0x154] sm:$0xf]
    %v161 = vld [vmem:[#allocation6 + $0x158] sm:$0xf]
    %v162 = vld [vmem:[#allocation6 + $0x15c] sm:$0xf]
    %v163 = vld [vmem:[#allocation6 + $0x160] sm:$0xf]
    %v164 = vld [vmem:[#allocation6 + $0x164] sm:$0xf]
    %v165 = vld [vmem:[#allocation6 + $0x168] sm:$0xf]
    %v166 = vld [vmem:[#allocation6 + $0x16c] sm:$0xf]
    %v167 = vld [vmem:[#allocation6 + $0x170] sm:$0xf]
    %v168 = vld [vmem:[#allocation6 + $0x174] sm:$0xf]
    %v169 = vld [vmem:[#allocation6 + $0x178] sm:$0xf]
    %v170 = vld [vmem:[#allocation6 + $0x17c] sm:$0xf]
    %v171 = vld [vmem:[#allocation6 + $0x180] sm:$0xf]
    %v172 = vld [vmem:[#allocation6 + $0x184] sm:$0xf]
    %v173 = vld [vmem:[#allocation6 + $0x188] sm:$0xf]
    %v174 = vld [vmem:[#allocation6 + $0x18c] sm:$0xf]
    %v175 = vld [vmem:[#allocation6 + $0x190] sm:$0xf]
    %v176 = vld [vmem:[#allocation6 + $0x194] sm:$0xf]
    %v177 = vld [vmem:[#allocation6 + $0x198] sm:$0xf]
    %v178 = vld [vmem:[#allocation6 + $0x19c] sm:$0xf]
    %v179 = vld [vmem:[#allocation6 + $0x1a0] sm:$0xf]
    %v180 = vld [vmem:[#allocation6 + $0x1a4] sm:$0xf]
    %v181 = vld [vmem:[#allocation6 + $0x1a8] sm:$0xf]
    %v182 = vld [vmem:[#allocation6 + $0x1ac] sm:$0xf]
    %v183 = vld [vmem:[#allocation6 + $0x1b0] sm:$0xf]
    %v184 = vld [vmem:[#allocation6 + $0x1b4] sm:$0xf]
    %v185 = vld [vmem:[#allocation6 + $0x1b8] sm:$0xf]
    %v186 = vld [vmem:[#allocation6 + $0x1bc] sm:$0xf]
    %v187 = vld [vmem:[#allocation6 + $0x1c0] sm:$0xf]
    %v188 = vld [vmem:[#allocation6 + $0x1c4] sm:$0xf]
    %v189 = vld [vmem:[#allocation6 + $0x1c8] sm:$0xf]
    %v190 = vld [vmem:[#allocation6 + $0x1cc] sm:$0xf]
    %v191 = vld [vmem:[#allocation6 + $0x1d0] sm:$0xf]
    %v192 = vld [vmem:[#allocation6 + $0x1d4] sm:$0xf]
    %v193 = vld [vmem:[#allocation6 + $0x1d8] sm:$0xf]
    %v194 = vld [vmem:[#allocation6 + $0x1dc] sm:$0xf]
    %v195 = vld [vmem:[#allocation6 + $0x1e0] sm:$0xf]
    %v196 = vld [vmem:[#allocation6 + $0x1e4] sm:$0xf]
    %v197 = vld [vmem:[#allocation6 + $0x1e8] sm:$0xf]
    %v198 = vld [vmem:[#allocation6 + $0x1ec] sm:$0xf]
    %v199 = vld [vmem:[#allocation6 + $0x1f0] sm:$0xf]
    %v200 = vld [vmem:[#allocation6 + $0x1f4] sm:$0xf]
    %v201 = vld [vmem:[#allocation6 + $0x1f8] sm:$0xf]
    %v202 = vld [vmem:[#allocation6 + $0x1fc] sm:$0xf]
    %v207 = vunpack.c.l.b16 %v71
    %v208 = vunpack.c.h.b16 %v71
    %v209 = vunpack.c.l.b16 %v72
    %v210 = vunpack.c.h.b16 %v72
    %v211 = vunpack.c.l.b16 %v73
    %v212 = vunpack.c.h.b16 %v73
    %v213 = vunpack.c.l.b16 %v74
    %v214 = vunpack.c.h.b16 %v74
    %v215 = vpack.c.b16 %v207, %v207
    %v216 = vpack.c.b16 %v208, %v208
    %v217 = vpack.c.b16 %v209, %v209
    %v218 = vpack.c.b16 %v210, %v210
    %v219 = vpack.c.b16 %v211, %v211
    %v220 = vpack.c.b16 %v212, %v212
    %v221 = vpack.c.b16 %v213, %v213
    %v222 = vpack.c.b16 %v214, %v214
    %v359 = vunpack.c.l.b16 %v75
    %v360 = vunpack.c.l.b16 %v76
    %v361 = vunpack.c.l.b16 %v77
    %v362 = vunpack.c.l.b16 %v78
    %v363 = vunpack.c.l.b16 %v79
    %v364 = vunpack.c.l.b16 %v80
    %v365 = vunpack.c.l.b16 %v81
    %v366 = vunpack.c.l.b16 %v82
    %v367 = vunpack.c.l.b16 %v83
    %v368 = vunpack.c.l.b16 %v84
    %v369 = vunpack.c.l.b16 %v85
    %v370 = vunpack.c.l.b16 %v86
    %v371 = vunpack.c.l.b16 %v87
    %v372 = vunpack.c.l.b16 %v88
    %v373 = vunpack.c.l.b16 %v89
    %v374 = vunpack.c.l.b16 %v90
    %v375 = vunpack.c.l.b16 %v91
    %v376 = vunpack.c.l.b16 %v92
    %v377 = vunpack.c.l.b16 %v93
    %v378 = vunpack.c.l.b16 %v94
    %v379 = vunpack.c.l.b16 %v95
    %v380 = vunpack.c.l.b16 %v96
    %v381 = vunpack.c.l.b16 %v97
    %v382 = vunpack.c.l.b16 %v98
    %v383 = vunpack.c.l.b16 %v99
    %v384 = vunpack.c.l.b16 %v100
    %v385 = vunpack.c.l.b16 %v101
    %v386 = vunpack.c.l.b16 %v102
    %v387 = vunpack.c.l.b16 %v103
    %v388 = vunpack.c.l.b16 %v104
    %v389 = vunpack.c.l.b16 %v105
    %v390 = vunpack.c.l.b16 %v106
    %v391 = vunpack.c.l.b16 %v107
    %v392 = vunpack.c.l.b16 %v108
    %v393 = vunpack.c.l.b16 %v109
    %v394 = vunpack.c.l.b16 %v110
    %v395 = vunpack.c.l.b16 %v111
    %v396 = vunpack.c.l.b16 %v112
    %v397 = vunpack.c.l.b16 %v113
    %v398 = vunpack.c.l.b16 %v114
    %v399 = vunpack.c.l.b16 %v115
    %v400 = vunpack.c.l.b16 %v116
    %v401 = vunpack.c.l.b16 %v117
    %v402 = vunpack.c.l.b16 %v118
    %v403 = vunpack.c.l.b16 %v119
    %v404 = vunpack.c.l.b16 %v120
    %v405 = vunpack.c.l.b16 %v121
    %v406 = vunpack.c.l.b16 %v122
    %v407 = vunpack.c.l.b16 %v123
    %v408 = vunpack.c.l.b16 %v124
    %v409 = vunpack.c.l.b16 %v125
    %v410 = vunpack.c.l.b16 %v126
    %v411 = vunpack.c.l.b16 %v127
    %v412 = vunpack.c.l.b16 %v128
    %v413 = vunpack.c.l.b16 %v129
    %v414 = vunpack.c.l.b16 %v130
    %v415 = vunpack.c.l.b16 %v131
    %v416 = vunpack.c.l.b16 %v132
    %v417 = vunpack.c.l.b16 %v133
    %v418 = vunpack.c.l.b16 %v134
    %v419 = vunpack.c.l.b16 %v135
    %v420 = vunpack.c.l.b16 %v136
    %v421 = vunpack.c.l.b16 %v137
    %v422 = vunpack.c.l.b16 %v138
    %v423 = vunpack.c.l.b16 %v139
    %v424 = vunpack.c.l.b16 %v140
    %v425 = vunpack.c.l.b16 %v141
    %v426 = vunpack.c.l.b16 %v142
    %v427 = vunpack.c.l.b16 %v143
    %v428 = vunpack.c.l.b16 %v144
    %v429 = vunpack.c.l.b16 %v145
    %v430 = vunpack.c.l.b16 %v146
    %v431 = vunpack.c.l.b16 %v147
    %v432 = vunpack.c.l.b16 %v148
    %v433 = vunpack.c.l.b16 %v149
    %v434 = vunpack.c.l.b16 %v150
    %v435 = vunpack.c.l.b16 %v151
    %v436 = vunpack.c.l.b16 %v152
    %v437 = vunpack.c.l.b16 %v153
    %v438 = vunpack.c.l.b16 %v154
    %v439 = vunpack.c.l.b16 %v155
    %v440 = vunpack.c.l.b16 %v156
    %v441 = vunpack.c.l.b16 %v157
    %v442 = vunpack.c.l.b16 %v158
    %v443 = vunpack.c.l.b16 %v159
    %v444 = vunpack.c.l.b16 %v160
    %v445 = vunpack.c.l.b16 %v161
    %v446 = vunpack.c.l.b16 %v162
    %v447 = vunpack.c.l.b16 %v163
    %v448 = vunpack.c.l.b16 %v164
    %v449 = vunpack.c.l.b16 %v165
    %v450 = vunpack.c.l.b16 %v166
    %v451 = vunpack.c.l.b16 %v167
    %v452 = vunpack.c.l.b16 %v168
    %v453 = vunpack.c.l.b16 %v169
    %v454 = vunpack.c.l.b16 %v170
    %v455 = vunpack.c.l.b16 %v171
    %v456 = vunpack.c.l.b16 %v172
    %v457 = vunpack.c.l.b16 %v173
    %v458 = vunpack.c.l.b16 %v174
    %v459 = vunpack.c.l.b16 %v175
    %v460 = vunpack.c.l.b16 %v176
    %v461 = vunpack.c.l.b16 %v177
    %v462 = vunpack.c.l.b16 %v178
    %v463 = vunpack.c.l.b16 %v179
    %v464 = vunpack.c.l.b16 %v180
    %v465 = vunpack.c.l.b16 %v181
    %v466 = vunpack.c.l.b16 %v182
    %v467 = vunpack.c.l.b16 %v183
    %v468 = vunpack.c.l.b16 %v184
    %v469 = vunpack.c.l.b16 %v185
    %v470 = vunpack.c.l.b16 %v186
    %v471 = vunpack.c.l.b16 %v187
    %v472 = vunpack.c.l.b16 %v188
    %v473 = vunpack.c.l.b16 %v189
    %v474 = vunpack.c.l.b16 %v190
    %v475 = vunpack.c.l.b16 %v191
    %v476 = vunpack.c.l.b16 %v192
    %v477 = vunpack.c.l.b16 %v193
    %v478 = vunpack.c.l.b16 %v194
    %v479 = vunpack.c.l.b16 %v195
    %v480 = vunpack.c.l.b16 %v196
    %v481 = vunpack.c.l.b16 %v197
    %v482 = vunpack.c.l.b16 %v198
    %v483 = vunpack.c.l.b16 %v199
    %v484 = vunpack.c.l.b16 %v200
    %v485 = vunpack.c.l.b16 %v201
    %v486 = vunpack.c.l.b16 %v202
    %v487 = vpack.c.b16 %v360, %v359
    %v488 = vpack.c.b16 %v362, %v361
    %v489 = vpack.c.b16 %v364, %v363
    %v490 = vpack.c.b16 %v366, %v365
    %v491 = vpack.c.b16 %v368, %v367
    %v492 = vpack.c.b16 %v370, %v369
    %v493 = vpack.c.b16 %v372, %v371
    %v494 = vpack.c.b16 %v374, %v373
    %v495 = vpack.c.b16 %v376, %v375
    %v496 = vpack.c.b16 %v378, %v377
    %v497 = vpack.c.b16 %v380, %v379
    %v498 = vpack.c.b16 %v382, %v381
    %v499 = vpack.c.b16 %v384, %v383
    %v500 = vpack.c.b16 %v386, %v385
    %v501 = vpack.c.b16 %v388, %v387
    %v502 = vpack.c.b16 %v390, %v389
    %v503 = vpack.c.b16 %v392, %v391
    %v504 = vpack.c.b16 %v394, %v393
    %v505 = vpack.c.b16 %v396, %v395
    %v506 = vpack.c.b16 %v398, %v397
    %v507 = vpack.c.b16 %v400, %v399
    %v508 = vpack.c.b16 %v402, %v401
    %v509 = vpack.c.b16 %v404, %v403
    %v510 = vpack.c.b16 %v406, %v405
    %v511 = vpack.c.b16 %v408, %v407
    %v512 = vpack.c.b16 %v410, %v409
    %v513 = vpack.c.b16 %v412, %v411
    %v514 = vpack.c.b16 %v414, %v413
    %v515 = vpack.c.b16 %v416, %v415
    %v516 = vpack.c.b16 %v418, %v417
    %v517 = vpack.c.b16 %v420, %v419
    %v518 = vpack.c.b16 %v422, %v421
    %v519 = vpack.c.b16 %v424, %v423
    %v520 = vpack.c.b16 %v426, %v425
    %v521 = vpack.c.b16 %v428, %v427
    %v522 = vpack.c.b16 %v430, %v429
    %v523 = vpack.c.b16 %v432, %v431
    %v524 = vpack.c.b16 %v434, %v433
    %v525 = vpack.c.b16 %v436, %v435
    %v526 = vpack.c.b16 %v438, %v437
    %v527 = vpack.c.b16 %v440, %v439
    %v528 = vpack.c.b16 %v442, %v441
    %v529 = vpack.c.b16 %v444, %v443
    %v530 = vpack.c.b16 %v446, %v445
    %v531 = vpack.c.b16 %v448, %v447
    %v532 = vpack.c.b16 %v450, %v449
    %v533 = vpack.c.b16 %v452, %v451
    %v534 = vpack.c.b16 %v454, %v453
    %v535 = vpack.c.b16 %v456, %v455
    %v536 = vpack.c.b16 %v458, %v457
    %v537 = vpack.c.b16 %v460, %v459
    %v538 = vpack.c.b16 %v462, %v461
    %v539 = vpack.c.b16 %v464, %v463
    %v540 = vpack.c.b16 %v466, %v465
    %v541 = vpack.c.b16 %v468, %v467
    %v542 = vpack.c.b16 %v470, %v469
    %v543 = vpack.c.b16 %v472, %v471
    %v544 = vpack.c.b16 %v474, %v473
    %v545 = vpack.c.b16 %v476, %v475
    %v546 = vpack.c.b16 %v478, %v477
    %v547 = vpack.c.b16 %v480, %v479
    %v548 = vpack.c.b16 %v482, %v481
    %v549 = vpack.c.b16 %v484, %v483
    %v550 = vpack.c.b16 %v486, %v485
    %615 = vmatprep.subr.bf16.mxu0 0
    %616 = vmatpush1.bf16.msra.mxu0 %v494
    %617 = vmatprep.subr.bf16.mxu0 0
    %618 = vmatpush1.bf16.msra.mxu0 %v493
    %619 = vmatprep.subr.bf16.mxu0 0
    %620 = vmatpush1.bf16.msra.mxu0 %v492
    %621 = vmatprep.subr.bf16.mxu0 0
    %622 = vmatpush1.bf16.msra.mxu0 %v491
    %623 = vmatprep.subr.bf16.mxu0 0
    %624 = vmatpush1.bf16.msra.mxu0 %v490
    %625 = vmatprep.subr.bf16.mxu0 0
    %626 = vmatpush1.bf16.msra.mxu0 %v489
    %627 = vmatprep.subr.bf16.mxu0 0
    %628 = vmatpush1.bf16.msra.mxu0 %v488
    %629 = vmatprep.subr.bf16.mxu0 0
    %630 = vmatpush1.bf16.msra.mxu0 %v487
    %631 = vmatprep.subr.bf16.mxu0 0
    %632 = vmatpush2.bf16.msra.mxu0 %v502
    %633 = vmatprep.subr.bf16.mxu0 0
    %634 = vmatpush2.bf16.msra.mxu0 %v501
    %635 = vmatprep.subr.bf16.mxu0 0
    %636 = vmatpush2.bf16.msra.mxu0 %v500
    %637 = vmatprep.subr.bf16.mxu0 0
    %638 = vmatpush2.bf16.msra.mxu0 %v499
    %639 = vmatprep.subr.bf16.mxu0 0
    %640 = vmatpush2.bf16.msra.mxu0 %v498
    %641 = vmatprep.subr.bf16.mxu0 0
    %642 = vmatpush2.bf16.msra.mxu0 %v497
    %643 = vmatprep.subr.bf16.mxu0 0
    %644 = vmatpush2.bf16.msra.mxu0 %v496
    %645 = vmatprep.subr.bf16.mxu0 0
    %646 = vmatpush2.bf16.msra.mxu0 %v495
    %647 = vmatprep.mubr.bf16.mxu0 %v216
    %648 = vmatmul.mubr.bf16.gmra.mxu0 %v215
    %v649 = vpop.f32.mrf.mxu0
    %v650 = vadd.f32 0.0, %v649
    %v651 = vpop.f32.mrf.mxu0
    %v652 = vpop.f32.mrf.mxu0
    %v653 = vpop.f32.mrf.mxu0
    %654 = vdwg.mxu0
    %655 = vmatprep.subr.bf16.mxu0 0
    %656 = vmatpush1.bf16.msra.mxu0 %v510
    %657 = vmatprep.subr.bf16.mxu0 0
    %658 = vmatpush1.bf16.msra.mxu0 %v509
    %659 = vmatprep.subr.bf16.mxu0 0
    %660 = vmatpush1.bf16.msra.mxu0 %v508
    %661 = vmatprep.subr.bf16.mxu0 0
    %662 = vmatpush1.bf16.msra.mxu0 %v507
    %663 = vmatprep.subr.bf16.mxu0 0
    %664 = vmatpush1.bf16.msra.mxu0 %v506
    %665 = vmatprep.subr.bf16.mxu0 0
    %666 = vmatpush1.bf16.msra.mxu0 %v505
    %667 = vmatprep.subr.bf16.mxu0 0
    %668 = vmatpush1.bf16.msra.mxu0 %v504
    %669 = vmatprep.subr.bf16.mxu0 0
    %670 = vmatpush1.bf16.msra.mxu0 %v503
    %671 = vmatprep.subr.bf16.mxu0 0
    %672 = vmatpush2.bf16.msra.mxu0 %v518
    %673 = vmatprep.subr.bf16.mxu0 0
    %674 = vmatpush2.bf16.msra.mxu0 %v517
    %675 = vmatprep.subr.bf16.mxu0 0
    %676 = vmatpush2.bf16.msra.mxu0 %v516
    %677 = vmatprep.subr.bf16.mxu0 0
    %678 = vmatpush2.bf16.msra.mxu0 %v515
    %679 = vmatprep.subr.bf16.mxu0 0
    %680 = vmatpush2.bf16.msra.mxu0 %v514
    %681 = vmatprep.subr.bf16.mxu0 0
    %682 = vmatpush2.bf16.msra.mxu0 %v513
    %683 = vmatprep.subr.bf16.mxu0 0
    %684 = vmatpush2.bf16.msra.mxu0 %v512
    %685 = vmatprep.subr.bf16.mxu0 0
    %686 = vmatpush2.bf16.msra.mxu0 %v511
    %687 = vmatprep.mubr.bf16.mxu0 %v218
    %688 = vmatmul.mubr.bf16.gmra.mxu0 %v217
    %v689 = vpop.f32.mrf.mxu0
    %v690 = vadd.f32 %v650, %v689
    %v691 = vpop.f32.mrf.mxu0
    %v692 = vpop.f32.mrf.mxu0
    %v693 = vpop.f32.mrf.mxu0
    %694 = vdwg.mxu0
    %695 = vmatprep.subr.bf16.mxu0 0
    %696 = vmatpush1.bf16.msra.mxu0 %v526
    %697 = vmatprep.subr.bf16.mxu0 0
    %698 = vmatpush1.bf16.msra.mxu0 %v525
    %699 = vmatprep.subr.bf16.mxu0 0
    %700 = vmatpush1.bf16.msra.mxu0 %v524
    %701 = vmatprep.subr.bf16.mxu0 0
    %702 = vmatpush1.bf16.msra.mxu0 %v523
    %703 = vmatprep.subr.bf16.mxu0 0
    %704 = vmatpush1.bf16.msra.mxu0 %v522
    %705 = vmatprep.subr.bf16.mxu0 0
    %706 = vmatpush1.bf16.msra.mxu0 %v521
    %707 = vmatprep.subr.bf16.mxu0 0
    %708 = vmatpush1.bf16.msra.mxu0 %v520
    %709 = vmatprep.subr.bf16.mxu0 0
    %710 = vmatpush1.bf16.msra.mxu0 %v519
    %711 = vmatprep.subr.bf16.mxu0 0
    %712 = vmatpush2.bf16.msra.mxu0 %v534
    %713 = vmatprep.subr.bf16.mxu0 0
    %714 = vmatpush2.bf16.msra.mxu0 %v533
    %715 = vmatprep.subr.bf16.mxu0 0
    %716 = vmatpush2.bf16.msra.mxu0 %v532
    %717 = vmatprep.subr.bf16.mxu0 0
    %718 = vmatpush2.bf16.msra.mxu0 %v531
    %719 = vmatprep.subr.bf16.mxu0 0
    %720 = vmatpush2.bf16.msra.mxu0 %v530
    %721 = vmatprep.subr.bf16.mxu0 0
    %722 = vmatpush2.bf16.msra.mxu0 %v529
    %723 = vmatprep.subr.bf16.mxu0 0
    %724 = vmatpush2.bf16.msra.mxu0 %v528
    %725 = vmatprep.subr.bf16.mxu0 0
    %726 = vmatpush2.bf16.msra.mxu0 %v527
    %727 = vmatprep.mubr.bf16.mxu0 %v220
    %728 = vmatmul.mubr.bf16.gmra.mxu0 %v219
    %v729 = vpop.f32.mrf.mxu0
    %v730 = vadd.f32 %v690, %v729
    %v731 = vpop.f32.mrf.mxu0
    %v732 = vpop.f32.mrf.mxu0
    %v733 = vpop.f32.mrf.mxu0
    %734 = vdwg.mxu0
    %735 = vmatprep.subr.bf16.mxu0 0
    %736 = vmatpush1.bf16.msra.mxu0 %v542
    %737 = vmatprep.subr.bf16.mxu0 0
    %738 = vmatpush1.bf16.msra.mxu0 %v541
    %739 = vmatprep.subr.bf16.mxu0 0
    %740 = vmatpush1.bf16.msra.mxu0 %v540
    %741 = vmatprep.subr.bf16.mxu0 0
    %742 = vmatpush1.bf16.msra.mxu0 %v539
    %743 = vmatprep.subr.bf16.mxu0 0
    %744 = vmatpush1.bf16.msra.mxu0 %v538
    %745 = vmatprep.subr.bf16.mxu0 0
    %746 = vmatpush1.bf16.msra.mxu0 %v537
    %747 = vmatprep.subr.bf16.mxu0 0
    %748 = vmatpush1.bf16.msra.mxu0 %v536
    %749 = vmatprep.subr.bf16.mxu0 0
    %750 = vmatpush1.bf16.msra.mxu0 %v535
    %751 = vmatprep.subr.bf16.mxu0 0
    %752 = vmatpush2.bf16.msra.mxu0 %v550
    %753 = vmatprep.subr.bf16.mxu0 0
    %754 = vmatpush2.bf16.msra.mxu0 %v549
    %755 = vmatprep.subr.bf16.mxu0 0
    %756 = vmatpush2.bf16.msra.mxu0 %v548
    %757 = vmatprep.subr.bf16.mxu0 0
    %758 = vmatpush2.bf16.msra.mxu0 %v547
    %759 = vmatprep.subr.bf16.mxu0 0
    %760 = vmatpush2.bf16.msra.mxu0 %v546
    %761 = vmatprep.subr.bf16.mxu0 0
    %762 = vmatpush2.bf16.msra.mxu0 %v545
    %763 = vmatprep.subr.bf16.mxu0 0
    %764 = vmatpush2.bf16.msra.mxu0 %v544
    %765 = vmatprep.subr.bf16.mxu0 0
    %766 = vmatpush2.bf16.msra.mxu0 %v543
    %767 = vmatprep.mubr.bf16.mxu0 %v222
    %768 = vmatmul.mubr.bf16.gmra.mxu0 %v221
    %v769 = vpop.f32.mrf.mxu0
    %v770 = vadd.f32 %v730, %v769
    %v771 = vpop.f32.mrf.mxu0
    %v772 = vpop.f32.mrf.mxu0
    %v773 = vpop.f32.mrf.mxu0
    %774 = vdwg.mxu0
    %v775 = vadd.f32 %v70, %v770
    %776 = vst [vmem:[#allocation2] sm:$0xff] %v775
    // Predicated region
    $region34: #{tpu_custom_call.1} parent=1 // pred_check
      %p777 = pneg %p58
    $region35: #{tpu_custom_call.1} parent=1 // pred_check_branch
      %779 = sbr.rel (%p777) target = $region37
    $region36: #{tpu_custom_call.1} parent=1 // pred_region
      %v780 = vld [vmem:[#allocation2] sm:$0xff]
      %v781 = vmul.f32 %v780, %v780
      %782 = vadd.xlane.f32.xlu0 %v781
      %v783 = vpop.xlane.xlu0 %782
      %v784 = vmax.f32 %v783, 1e-24
      %v785 = vrsqrt.pop %v784
      %v786 = vmul.f32 %v780, %v785
      %v787 = vpack.c.bf16 %v786, %v786
      %v788 = vld [vmem:[#allocation8] sm:$0xff]
      %v789 = vld [vmem:[#allocation8 + $0x8] sm:$0xff]
      %v790 = vld [vmem:[#allocation8 + $0x10] sm:$0xff]
      %v791 = vld [vmem:[#allocation8 + $0x18] sm:$0xff]
      %v792 = vld [vmem:[#allocation8 + $0x20] sm:$0xff]
      %v793 = vld [vmem:[#allocation8 + $0x28] sm:$0xff]
      %v794 = vld [vmem:[#allocation8 + $0x30] sm:$0xff]
      %v795 = vld [vmem:[#allocation8 + $0x38] sm:$0xff]
      %v796 = vld [vmem:[#allocation8 + $0x40] sm:$0xff]
      %v797 = vld [vmem:[#allocation8 + $0x48] sm:$0xff]
      %v798 = vld [vmem:[#allocation8 + $0x50] sm:$0xff]
      %v799 = vld [vmem:[#allocation8 + $0x58] sm:$0xff]
      %v800 = vld [vmem:[#allocation8 + $0x60] sm:$0xff]
      %v801 = vld [vmem:[#allocation8 + $0x68] sm:$0xff]
      %v802 = vld [vmem:[#allocation8 + $0x70] sm:$0xff]
      %v803 = vld [vmem:[#allocation8 + $0x78] sm:$0xff]
      %v820 = vunpack.c.l.b16 %v788
      %v821 = vunpack.c.h.b16 %v788
      %v822 = vunpack.c.l.b16 %v789
      %v823 = vunpack.c.h.b16 %v789
      %v824 = vunpack.c.l.b16 %v790
      %v825 = vunpack.c.h.b16 %v790
      %v826 = vunpack.c.l.b16 %v791
      %v827 = vunpack.c.h.b16 %v791
      %v828 = vunpack.c.l.b16 %v792
      %v829 = vunpack.c.h.b16 %v792
      %v830 = vunpack.c.l.b16 %v793
      %v831 = vunpack.c.h.b16 %v793
      %v832 = vunpack.c.l.b16 %v794
      %v833 = vunpack.c.h.b16 %v794
      %v834 = vunpack.c.l.b16 %v795
      %v835 = vunpack.c.h.b16 %v795
      %v836 = vunpack.c.l.b16 %v796
      %v837 = vunpack.c.h.b16 %v796
      %v838 = vunpack.c.l.b16 %v797
      %v839 = vunpack.c.h.b16 %v797
      %v840 = vunpack.c.l.b16 %v798
      %v841 = vunpack.c.h.b16 %v798
      %v842 = vunpack.c.l.b16 %v799
      %v843 = vunpack.c.h.b16 %v799
      %v844 = vunpack.c.l.b16 %v800
      %v845 = vunpack.c.h.b16 %v800
      %v846 = vunpack.c.l.b16 %v801
      %v847 = vunpack.c.h.b16 %v801
      %v848 = vunpack.c.l.b16 %v802
      %v849 = vunpack.c.h.b16 %v802
      %v850 = vunpack.c.l.b16 %v803
      %v851 = vunpack.c.h.b16 %v803
      %v852 = vpack.c.b16 %v822, %v820
      %v853 = vpack.c.b16 %v823, %v821
      %v854 = vpack.c.b16 %v826, %v824
      %v855 = vpack.c.b16 %v827, %v825
      %v856 = vpack.c.b16 %v830, %v828
      %v857 = vpack.c.b16 %v831, %v829
      %v858 = vpack.c.b16 %v834, %v832
      %v859 = vpack.c.b16 %v835, %v833
      %v860 = vpack.c.b16 %v838, %v836
      %v861 = vpack.c.b16 %v839, %v837
      %v862 = vpack.c.b16 %v842, %v840
      %v863 = vpack.c.b16 %v843, %v841
      %v864 = vpack.c.b16 %v846, %v844
      %v865 = vpack.c.b16 %v847, %v845
      %v866 = vpack.c.b16 %v850, %v848
      %v867 = vpack.c.b16 %v851, %v849
      %884 = vmatprep.subr.bf16.mxu0 %v867
      %885 = vmatpush1.bf16.msra.mxu0 %v866
      %886 = vmatprep.subr.bf16.mxu0 %v865
      %887 = vmatpush1.bf16.msra.mxu0 %v864
      %888 = vmatprep.subr.bf16.mxu0 %v863
      %889 = vmatpush1.bf16.msra.mxu0 %v862
      %890 = vmatprep.subr.bf16.mxu0 %v861
      %891 = vmatpush1.bf16.msra.mxu0 %v860
      %892 = vmatprep.subr.bf16.mxu0 %v859
      %893 = vmatpush1.bf16.msra.mxu0 %v858
      %894 = vmatprep.subr.bf16.mxu0 %v857
      %895 = vmatpush1.bf16.msra.mxu0 %v856
      %896 = vmatprep.subr.bf16.mxu0 %v855
      %897 = vmatpush1.bf16.msra.mxu0 %v854
      %898 = vmatprep.subr.bf16.mxu0 %v853
      %899 = vmatpush1.bf16.msra.mxu0 %v852
      %900 = vmatprep.subr.bf16.mxu0 0
      %901 = vmatpush2.bf16.msra.mxu0 0
      %902 = vmatprep.subr.bf16.mxu0 0
      %903 = vmatpush2.bf16.msra.mxu0 0
      %904 = vmatprep.subr.bf16.mxu0 0
      %905 = vmatpush2.bf16.msra.mxu0 0
      %906 = vmatprep.subr.bf16.mxu0 0
      %907 = vmatpush2.bf16.msra.mxu0 0
      %908 = vmatprep.subr.bf16.mxu0 0
      %909 = vmatpush2.bf16.msra.mxu0 0
      %910 = vmatprep.subr.bf16.mxu0 0
      %911 = vmatpush2.bf16.msra.mxu0 0
      %912 = vmatprep.subr.bf16.mxu0 0
      %913 = vmatpush2.bf16.msra.mxu0 0
      %914 = vmatprep.subr.bf16.mxu0 0
      %915 = vmatpush2.bf16.msra.mxu0 0
      %916 = vmatprep.mubr.bf16.mxu0 0
      %917 = vmatmul.mubr.bf16.gmra.mxu0 %v787
      %v918 = vpop.f32.mrf.mxu0
      %v919 = vadd.f32 0.0, %v918
      %v920 = vpop.f32.mrf.mxu0
      %v921 = vadd.f32 0.0, %v920
      %v922 = vpop.f32.mrf.mxu0
      %v923 = vpop.f32.mrf.mxu0
      %924 = vdwg.mxu0
      %v925 = vmul.f32 %v919, 100.0
      %v926 = vmul.f32 %v921, 100.0
      %v927 = vlaneseq
      %v928 = vand.u32 %v927, 127
      %vm929 = vcmp.lt.s32.totalorder %v928, 16
      %v930 = vsel %vm929, %v925, -1e+30
      %v931 = vmax.f32 %v930, %v926
      %v932 = vsub.f32 %v930, %v931
      %v933 = vmul.f32 %v932, 1.442695
      %v934 = vpow.pop %v933
      %v935 = vsub.f32 %v926, %v931
      %v936 = vmul.f32 %v935, 1.442695
      %v937 = vpow.pop %v936
      %v938 = vadd.f32 %v934, %v937
      %v939 = vrcp.pop %v938
      %v940 = vmul.f32 %v934, %v939
      %941 = vmax.xlane.f32.xlu0 %v930
      %v942 = vpop.xlane.xlu0 %941
      %v943 = vsub.f32 %v930, %v942
      %v944 = vmul.f32 %v943, 1.442695
      %v945 = vpow.pop %v944
      %946 = vadd.xlane.f32.xlu0 %v945
      %v947 = vpop.xlane.xlu0 %946
      %v948 = vrcp.pop %v947
      %v949 = vmul.f32 %v945, %v948
      %vm950 = vcmp.eq.f32.partialorder %v930, %v942
      %v951 = vsel %vm950, %v928, 128
      %v952 = vand.u32 %v951, 65535
      %v953 = vshra.s32 %v951, 16
      %v954 = vcvt.s32.f32 %v952
      %v955 = vcvt.s32.f32 %v953
      %956 = vmin.xlane.f32.xlu0 %v955
      %v957 = vpop.xlane.xlu0 %956
      %vm958 = vcmp.eq.f32.partialorder %v955, %v957
      %v959 = vsel %vm958, %v954, inf
      %960 = vmin.xlane.f32.xlu0 %v959
      %v961 = vpop.xlane.xlu0 %960
      %v962 = vcvt.f32.s32 %v961
      %v963 = vcvt.f32.s32 %v957
      %v964 = vshll.u32 %v963, 16
      %v965 = vadd.s32 %v964, %v962
      %vm966 = vcmp.eq.s32.totalorder %v928, %v965
      %v967 = vsel %vm966, 1, 0
      %v968 = vcvt.s32.f32 %v967
      %v969 = vmul.f32 %v940, %v968
      %970 = vadd.xlane.f32.xlu0 %v969
      %v971 = vpop.xlane.xlu0 %970
      %v972 = vsub.f32 1.0, %v971
      %v973 = vmul.f32 %v940, %v949
      %974 = vadd.xlane.f32.xlu0 %v973
      %v975 = vpop.xlane.xlu0 %974
      %v976 = vsub.f32 1.0, %v975
      %vm977 = vcmp.eq.s32.totalorder %v928, 0
      %vm978 = vcmp.eq.s32.totalorder %v928, 1
      %v979 = vsel %vm978, %v976, 0.0
      %v980 = vsel %vm977, %v972, %v979
      %981 = vst [vmem:[#allocation9] sm:$0xff] %v980
    $region37: #{tpu_custom_call.1} parent=1 // pred_fallthru
      _
    // Predicated region
    $region38: #{tpu_custom_call.1} parent=1 // pred_check
      _
    $region39: #{tpu_custom_call.1} parent=1 // pred_check_branch
      %983 = sbr.rel (0) target = $region41
    $region40: #{tpu_custom_call.1} parent=1 // pred_region
      %s985 = ssub.s32 128, 128
      %986 = vsyncadd [#allocation5], %s985
      %s988 = sshll.u32 [#allocation9], 4
      %s989 = int_to_ptr.vmem [resolvable:$true] %s988
      %991 = dma.vmem_to_hbm [thread:$0]  %s989, 128, %s4, [#allocation5]
    $region41: #{tpu_custom_call.1} parent=1 // pred_fallthru
      _
    // Predicated region
    $region42: #{tpu_custom_call.1} parent=1 // pred_check
      _
    $region43: #{tpu_custom_call.1} parent=1 // pred_check_branch
      %993 = sbr.rel (0) target = $region45
    $region44: #{tpu_custom_call.1} parent=1 // pred_region
      %994 = dma.done [#allocation5], 128
    $region45: #{tpu_custom_call.1} parent=1 // pred_fallthru
      _
    %995 = vsyncpa [#allocation4], 1
    %996 = vsyncpa [#allocation7], 1
    %997 = vsyncpa [#allocation5], 1

</llo_original>
